<compile_context>
chip_gen: v7x
topology: tpu7x:2x2x1
jax: 0.10.0
libtpu: 0.0.40
codegen_flags: <defaults>
</compile_context>

<pallas_src>
import functools

import jax
import jax.numpy as jnp
from jax.experimental import pallas as pl
from jax.experimental.pallas import tpu as pltpu


# ----------------------------------------------------------------------------
# Kernels
# ----------------------------------------------------------------------------
def _rbn_train_kernel(idx_ref, x_ref, rm_in_ref, rv_in_ref, w_ref, b_ref,
                      y_ref, rm_out_ref, rv_out_ref,
                      rm_acc, rv_acc, mean_sc, uvar_sc,
                      *, eps, momentum, n, tb, max_len, t_total):
    blk = pl.program_id(0)

    # Initialize the resident f32 running-stat accumulators once.
    @pl.when(blk == 0)
    def _():
        rm_acc[...] = rm_in_ref[...].astype(jnp.float32)
        rv_acc[...] = rv_in_ref[...].astype(jnp.float32)

    # Vectorized batch-norm math over all TB timesteps of this block.
    x = x_ref[...].astype(jnp.float32)                    # (TB, N, C)
    mean = jnp.mean(x, axis=1, keepdims=True)             # (TB, 1, C)
    diff = x - mean
    var = jnp.mean(diff * diff, axis=1, keepdims=True)    # biased variance
    inv_std = jax.lax.rsqrt(var + eps)
    w = w_ref[...].astype(jnp.float32)                    # (1, C)
    b = b_ref[...].astype(jnp.float32)
    y_ref[...] = (diff * inv_std * w + b).astype(y_ref.dtype)

    # Stage per-timestep stats (PyTorch updates running_var with the
    # *unbiased* variance).
    mean_sc[...] = mean
    uvar_sc[...] = var * (float(n) / float(n - 1))

    # Sequential running-stat update (momentum compounding on repeated
    # indices, matching per-step PyTorch calls).  One-hot row select keeps
    # this as pure full-table VPU ops on the tiny (max_len, C) accumulators.
    row_ids = jax.lax.broadcasted_iota(jnp.int32, (max_len, 1), 0)

    def update(t, carry):
        g = blk * tb + t                                  # global timestep
        idx = jnp.clip(idx_ref[g], 0, max_len - 1)
        sel = jnp.logical_and(row_ids == idx, g < t_total)   # (max_len, 1)
        m_new = (1.0 - momentum) * rm_acc[...] + momentum * mean_sc[t]
        v_new = (1.0 - momentum) * rv_acc[...] + momentum * uvar_sc[t]
        rm_acc[...] = jnp.where(sel, m_new, rm_acc[...])
        rv_acc[...] = jnp.where(sel, v_new, rv_acc[...])
        return carry

    jax.lax.fori_loop(0, tb, update, 0, unroll=bool(tb <= 32))

    # Single writeback of the full stat tables at the end of the grid.
    @pl.when(blk == pl.num_programs(0) - 1)
    def _():
        rm_out_ref[...] = rm_acc[...].astype(rm_out_ref.dtype)
        rv_out_ref[...] = rv_acc[...].astype(rv_out_ref.dtype)


def _rbn_eval_kernel(idx_ref, x_ref, rm_ref, rv_ref, w_ref, b_ref, y_ref,
                     scale_tab, shift_tab, scale_g, shift_g,
                     *, eps, tb, max_len):
    blk = pl.program_id(0)

    # Fold normalization into per-channel scale/shift for every stat row
    # (one rsqrt per (row, channel), recomputed per step so no cross-step
    # state -> grid can stay "parallel").
    rm = rm_ref[...].astype(jnp.float32)                  # (max_len, C)
    rv = rv_ref[...].astype(jnp.float32)
    w = w_ref[...].astype(jnp.float32)                    # (1, C)
    b = b_ref[...].astype(jnp.float32)
    scale = w * jax.lax.rsqrt(rv + eps)
    scale_tab[...] = scale
    shift_tab[...] = b - rm * scale

    def gather(t, carry):
        idx = jnp.clip(idx_ref[blk * tb + t], 0, max_len - 1)
        scale_g[t] = scale_tab[pl.ds(idx, 1), :]
        shift_g[t] = shift_tab[pl.ds(idx, 1), :]
        return carry

    jax.lax.fori_loop(0, tb, gather, 0, unroll=bool(tb <= 32))

    x = x_ref[...].astype(jnp.float32)                    # (TB, N, C)
    y_ref[...] = (x * scale_g[...] + shift_g[...]).astype(y_ref.dtype)


# ----------------------------------------------------------------------------
# Wrapper
# ----------------------------------------------------------------------------
def _choose_block_timesteps(T, N, C, itemsize,
                            target_bytes=1 << 20, cap_bytes=4 << 20):
    per_t = max(1, N * C * itemsize)
    tb = max(1, min(T, target_bytes // per_t))
    while tb > 1 and tb * per_t > cap_bytes:
        tb = (tb + 1) // 2
    return int(tb)


def recurrent_batch_norm(x, indices, running_mean, running_var,
                         weight=None, bias=None, *, max_len,
                         eps=1e-5, momentum=0.1, training=True,
                         block_timesteps=None):
    """Pallas forward of recurrent_BatchNorm, fused over timesteps.

    x:            (T, N, C)  -- or (N, C) for a single timestep
    indices:      (T,) int   -- or a scalar; clamped like the PyTorch module
    running_mean: (max_len, C)
    running_var:  (max_len, C)
    weight, bias: (C,) or None (affine=False)

    Returns (y, new_running_mean, new_running_var).  Eval mode returns the
    running stats unchanged (PyTorch does not update them in eval).
    Repeated indices compound sequentially, matching per-step PyTorch calls.
    """
    squeeze = (x.ndim == 2)
    if squeeze:
        x = x[None]
    T, N, C = x.shape
    assert running_mean.shape == (max_len, C)
    assert running_var.shape == (max_len, C)

    if weight is None:
        weight = jnp.ones((C,), dtype=jnp.float32)
    if bias is None:
        bias = jnp.zeros((C,), dtype=jnp.float32)

    idx_arr = jnp.atleast_1d(jnp.asarray(indices, dtype=jnp.int32))
    assert idx_arr.shape == (T,)

    x_itemsize = jnp.dtype(x.dtype).itemsize
    tb = block_timesteps or _choose_block_timesteps(T, N, C, x_itemsize)
    tb = int(max(1, min(tb, T)))
    num_blocks = -(-T // tb)
    t_pad = num_blocks * tb
    if t_pad != T:
        x = jnp.pad(x, ((0, t_pad - T), (0, 0), (0, 0)))
        idx_arr = jnp.pad(idx_arr, (0, t_pad - T))

    w2 = weight.reshape(1, C)
    b2 = bias.reshape(1, C)

    x_spec = pl.BlockSpec((tb, N, C), lambda blk, idx: (blk, 0, 0))
    stat_spec = pl.BlockSpec((max_len, C), lambda blk, idx: (0, 0))
    wb_spec = pl.BlockSpec((1, C), lambda blk, idx: (0, 0))
    scratch = [
        pltpu.VMEM((max_len, C), jnp.float32),
        pltpu.VMEM((max_len, C), jnp.float32),
        pltpu.VMEM((tb, 1, C), jnp.float32),
        pltpu.VMEM((tb, 1, C), jnp.float32),
    ]

    # VMEM budget: x/y blocks are each double-buffered; stat tables + scratch
    # are tiny.  Cap at 48 MiB (safe on v7x's 64 MiB physical VMEM).
    stat_itemsize = jnp.dtype(running_mean.dtype).itemsize
    x_block_bytes = tb * N * C * x_itemsize
    tables_bytes = 4 * max_len * C * max(stat_itemsize, 4)
    scratch_bytes = 2 * max_len * C * 4 + 2 * tb * C * 4
    need = 4 * x_block_bytes + 2 * tables_bytes + scratch_bytes + (2 << 20)
    vmem_limit = int(min(max(need, 16 << 20), 48 << 20))

    cost = pl.CostEstimate(
        flops=int(10 * t_pad * N * C),
        transcendentals=int(t_pad * C if training else max_len * C),
        bytes_accessed=int(2 * t_pad * N * C * x_itemsize
                           + 4 * max_len * C * stat_itemsize
                           + 2 * C * jnp.dtype(weight.dtype).itemsize
                           + 4 * t_pad),
    )

    if training:
        # PyTorch's F.batch_norm requires N > 1 in training (unbiased var).
        assert N > 1, "training-mode batch_norm needs batch size > 1"
        kernel = functools.partial(
            _rbn_train_kernel, eps=float(eps), momentum=float(momentum),
            n=N, tb=tb, max_len=max_len, t_total=T)
        grid_spec = pltpu.PrefetchScalarGridSpec(
            num_scalar_prefetch=1,
            grid=(num_blocks,),
            in_specs=[x_spec, stat_spec, stat_spec, wb_spec, wb_spec],
            out_specs=[x_spec, stat_spec, stat_spec],
            scratch_shapes=scratch,
        )
        y, new_rm, new_rv = pl.pallas_call(
            kernel,
            grid_spec=grid_spec,
            out_shape=(
                jax.ShapeDtypeStruct((t_pad, N, C), x.dtype),
                jax.ShapeDtypeStruct((max_len, C), running_mean.dtype),
                jax.ShapeDtypeStruct((max_len, C), running_var.dtype),
            ),
            compiler_params=pltpu.CompilerParams(
                # Sequential: the resident stat accumulator is carried across
                # grid steps (and repeated indices must compound in order).
                dimension_semantics=("arbitrary",),
                vmem_limit_bytes=vmem_limit),
            cost_estimate=cost,
        )(idx_arr, x, running_mean, running_var, w2, b2)
    else:
        kernel = functools.partial(_rbn_eval_kernel, eps=float(eps),
                                   tb=tb, max_len=max_len)
        grid_spec = pltpu.PrefetchScalarGridSpec(
            num_scalar_prefetch=1,
            grid=(num_blocks,),
            in_specs=[x_spec, stat_spec, stat_spec, wb_spec, wb_spec],
            out_specs=x_spec,
            scratch_shapes=scratch,
        )
        y = pl.pallas_call(
            kernel,
            grid_spec=grid_spec,
            out_shape=jax.ShapeDtypeStruct((t_pad, N, C), x.dtype),
            compiler_params=pltpu.CompilerParams(
                # No cross-step state in eval -> safe to shard on v7x's 2 TCs.
                dimension_semantics=("parallel",),
                vmem_limit_bytes=vmem_limit),
            cost_estimate=cost,
        )(idx_arr, x, running_mean, running_var, w2, b2)
        new_rm, new_rv = running_mean, running_var

    y = y[:T]
    if squeeze:
        y = y[0]
    return y, new_rm, new_rv


# ----------------------------------------------------------------------------
# Pure-JAX reference (mirrors F.batch_norm semantics per timestep).
# ----------------------------------------------------------------------------
def _reference_step(x, idx, rm_full, rv_full, weight, bias,
                    *, max_len, eps, momentum, training):
    idx = min(int(idx), max_len - 1)
    rm = rm_full[idx]
    rv = rv_full[idx]
    x = x.astype(jnp.float32)
    if training:
        mean = jnp.mean(x, axis=0)
        var = jnp.mean((x - mean) ** 2, axis=0)
        y = (x - mean) / jnp.sqrt(var + eps) * weight + bias
        n = x.shape[0]
        unbiased = var * (n / (n - 1))
        rm_full = rm_full.at[idx].set((1 - momentum) * rm + momentum * mean)
        rv_full = rv_full.at[idx].set((1 - momentum) * rv + momentum * unbiased)
    else:
        y = (x - rm) / jnp.sqrt(rv + eps) * weight + bias
    return y, rm_full, rv_full


if __name__ == "__main__":
    # Module config (deterministic init, matching __init__ / reset_parameters)
    num_features = 32
    max_len = 8
    batch = 16
    T = 10
    eps = 1e-5
    momentum = 0.1

    key = jax.random.PRNGKey(0)
    k_x, k_w, k_x2 = jax.random.split(key, 3)

    x_seq = jax.random.normal(k_x, (T, batch, num_features), dtype=jnp.float32)
    weight = jax.random.uniform(k_w, (num_features,), dtype=jnp.float32)  # uniform_()
    bias = jnp.zeros((num_features,), dtype=jnp.float32)                  # zero_()
    running_mean = jnp.zeros((max_len, num_features), dtype=jnp.float32)  # zeros
    running_var = jnp.ones((max_len, num_features), dtype=jnp.float32)    # ones
    # Includes an out-of-range index (9 -> clamps to 7) and repeated rows
    # (row 3 twice, row 7 twice) to exercise sequential momentum compounding.
    indices = jnp.array([0, 1, 2, 3, 4, 5, 6, 9, 3, 7], dtype=jnp.int32)

    # ---- training mode: all timesteps fused, TB=4 -> 3 grid steps + padding ----
    y, new_rm, new_rv = recurrent_batch_norm(
        x_seq, indices, running_mean, running_var, weight, bias,
        max_len=max_len, eps=eps, momentum=momentum, training=True,
        block_timesteps=4)
    jax.block_until_ready((y, new_rm, new_rv))

    rm_ref_full, rv_ref_full = running_mean, running_var
    y_refs = []
    for t in range(T):
        y_t, rm_ref_full, rv_ref_full = _reference_step(
            x_seq[t], int(indices[t]), rm_ref_full, rv_ref_full, weight, bias,
            max_len=max_len, eps=eps, momentum=momentum, training=True)
        y_refs.append(y_t)
    y_ref = jnp.stack(y_refs)

    assert jnp.allclose(y, y_ref, atol=1e-4, rtol=1e-4)
    assert jnp.allclose(new_rm, rm_ref_full, atol=1e-5, rtol=1e-5)
    assert jnp.allclose(new_rv, rv_ref_full, atol=1e-5, rtol=1e-5)

    # ---- eval mode, single timestep, exercises the index clamp (11 -> 7) ----
    x_single = jax.random.normal(k_x2, (batch, num_features), dtype=jnp.float32)
    y_e, _, _ = recurrent_batch_norm(
        x_single, 11, new_rm, new_rv, weight, bias,
        max_len=max_len, eps=eps, momentum=momentum, training=False)
    jax.block_until_ready(y_e)

    y_e_ref, _, _ = _reference_step(
        x_single, 11, new_rm, new_rv, weight, bias,
        max_len=max_len, eps=eps, momentum=momentum, training=False)

    assert jnp.allclose(y_e, y_e_ref, atol=1e-4, rtol=1e-4)

    print("KERNEL_OK")
</pallas_src>

<mosaic_0001>
module attributes {stable_mosaic.version = 11 : i64} {
  func.func @_rbn_train_kernel(%arg0: i32, %arg1: memref<12xi32, #tpu.memory_space<smem>>, %arg2: memref<4x16x32xf32, #tpu.memory_space<vmem>>, %arg3: memref<8x32xf32, #tpu.memory_space<vmem>>, %arg4: memref<8x32xf32, #tpu.memory_space<vmem>>, %arg5: memref<1x32xf32, #tpu.memory_space<vmem>>, %arg6: memref<1x32xf32, #tpu.memory_space<vmem>>, %arg7: memref<4x16x32xf32, #tpu.memory_space<vmem>>, %arg8: memref<8x32xf32, #tpu.memory_space<vmem>>, %arg9: memref<8x32xf32, #tpu.memory_space<vmem>>, %arg10: memref<8x32xf32, #tpu.memory_space<vmem>>, %arg11: memref<8x32xf32, #tpu.memory_space<vmem>>, %arg12: memref<4x1x32xf32, #tpu.memory_space<vmem>>, %arg13: memref<4x1x32xf32, #tpu.memory_space<vmem>>) attributes {dimension_semantics = [#tpu.dimension_semantics<arbitrary>], iteration_bounds = array<i64: 3>, scalar_prefetch = 1 : i64, scratch_operands = 4 : i64, tpu.core_type = #tpu.core_type<tc>, window_params = [{transform_indices = @transform_0, window_bounds = array<i64: 4, 16, 32>}, {pipeline_mode = #tpu.pipeline_mode<synchronous>, transform_indices = @transform_1, window_bounds = array<i64: 8, 32>}, {pipeline_mode = #tpu.pipeline_mode<synchronous>, transform_indices = @transform_2, window_bounds = array<i64: 8, 32>}, {pipeline_mode = #tpu.pipeline_mode<synchronous>, transform_indices = @transform_3, window_bounds = array<i64: 1, 32>}, {pipeline_mode = #tpu.pipeline_mode<synchronous>, transform_indices = @transform_4, window_bounds = array<i64: 1, 32>}, {transform_indices = @transform_5, window_bounds = array<i64: 4, 16, 32>}, {pipeline_mode = #tpu.pipeline_mode<synchronous>, transform_indices = @transform_6, window_bounds = array<i64: 8, 32>}, {pipeline_mode = #tpu.pipeline_mode<synchronous>, transform_indices = @transform_7, window_bounds = array<i64: 8, 32>}]} {
    %c0_i32 = arith.constant 0 : i32
    %0 = arith.cmpi eq, %arg0, %c0_i32 : i32
    %1 = arith.extui %0 : i1 to i32
    %c0_i32_0 = arith.constant 0 : i32
    %2 = arith.cmpi ne, %1, %c0_i32_0 : i32
    scf.if %2 {
      %c0_118 = arith.constant 0 : index
      %c0_119 = arith.constant 0 : index
      %201 = vector.load %arg3[%c0_118, %c0_119] : memref<8x32xf32, #tpu.memory_space<vmem>>, vector<8x32xf32>
      %c0_120 = arith.constant 0 : index
      %c0_121 = arith.constant 0 : index
      %202 = vector.load %arg10[%c0_120, %c0_121] : memref<8x32xf32, #tpu.memory_space<vmem>>, vector<8x32xf32>
      tpu.vector_store %arg10[%c0_120, %c0_121], %201 {strides = array<i32>} : memref<8x32xf32, #tpu.memory_space<vmem>>, vector<8x32xf32>,
      %c0_122 = arith.constant 0 : index
      %c0_123 = arith.constant 0 : index
      %203 = vector.load %arg4[%c0_122, %c0_123] : memref<8x32xf32, #tpu.memory_space<vmem>>, vector<8x32xf32>
      %c0_124 = arith.constant 0 : index
      %c0_125 = arith.constant 0 : index
      %204 = vector.load %arg11[%c0_124, %c0_125] : memref<8x32xf32, #tpu.memory_space<vmem>>, vector<8x32xf32>
      tpu.vector_store %arg11[%c0_124, %c0_125], %203 {strides = array<i32>} : memref<8x32xf32, #tpu.memory_space<vmem>>, vector<8x32xf32>,
    } else {
    }
    %c0 = arith.constant 0 : index
    %c0_1 = arith.constant 0 : index
    %c0_2 = arith.constant 0 : index
    %3 = vector.load %arg2[%c0, %c0_1, %c0_2] : memref<4x16x32xf32, #tpu.memory_space<vmem>>, vector<4x16x32xf32>
    %cst = arith.constant dense<0.000000e+00> : vector<4x32xf32>
    %4 = vector.multi_reduction <add>, %3, %cst [1] : vector<4x16x32xf32> to vector<4x32xf32>
    %5 = vector.shape_cast %4 : vector<4x32xf32> to vector<4x1x32xf32>
    %cst_3 = arith.constant 1.600000e+01 : f32
    %6 = vector.broadcast %cst_3 : f32 to vector<4x1x32xf32>
    %7 = arith.divf %5, %6 : vector<4x1x32xf32>
    %8 = vector.broadcast %7 : vector<4x1x32xf32> to vector<4x16x32xf32>
    %9 = arith.subf %3, %8 : vector<4x16x32xf32>
    %10 = arith.mulf %9, %9 : vector<4x16x32xf32>
    %cst_4 = arith.constant dense<0.000000e+00> : vector<4x32xf32>
    %11 = vector.multi_reduction <add>, %10, %cst_4 [1] : vector<4x16x32xf32> to vector<4x32xf32>
    %12 = vector.shape_cast %11 : vector<4x32xf32> to vector<4x1x32xf32>
    %cst_5 = arith.constant 1.600000e+01 : f32
    %13 = vector.broadcast %cst_5 : f32 to vector<4x1x32xf32>
    %14 = arith.divf %12, %13 : vector<4x1x32xf32>
    %cst_6 = arith.constant 9.99999974E-6 : f32
    %15 = vector.broadcast %cst_6 : f32 to vector<4x1x32xf32>
    %16 = arith.addf %14, %15 : vector<4x1x32xf32>
    %17 = math.rsqrt %16 : vector<4x1x32xf32>
    %c0_7 = arith.constant 0 : index
    %c0_8 = arith.constant 0 : index
    %18 = vector.load %arg5[%c0_7, %c0_8] : memref<1x32xf32, #tpu.memory_space<vmem>>, vector<1x32xf32>
    %c0_9 = arith.constant 0 : index
    %c0_10 = arith.constant 0 : index
    %19 = vector.load %arg6[%c0_9, %c0_10] : memref<1x32xf32, #tpu.memory_space<vmem>>, vector<1x32xf32>
    %20 = vector.broadcast %17 : vector<4x1x32xf32> to vector<4x16x32xf32>
    %21 = arith.mulf %9, %20 : vector<4x16x32xf32>
    %22 = vector.shape_cast %18 : vector<1x32xf32> to vector<1x1x32xf32>
    %23 = vector.broadcast %22 : vector<1x1x32xf32> to vector<4x16x32xf32>
    %24 = arith.mulf %21, %23 : vector<4x16x32xf32>
    %25 = vector.shape_cast %19 : vector<1x32xf32> to vector<1x1x32xf32>
    %26 = vector.broadcast %25 : vector<1x1x32xf32> to vector<4x16x32xf32>
    %27 = arith.addf %24, %26 : vector<4x16x32xf32>
    %c0_11 = arith.constant 0 : index
    %c0_12 = arith.constant 0 : index
    %c0_13 = arith.constant 0 : index
    %28 = vector.load %arg7[%c0_11, %c0_12, %c0_13] : memref<4x16x32xf32, #tpu.memory_space<vmem>>, vector<4x16x32xf32>
    tpu.vector_store %arg7[%c0_11, %c0_12, %c0_13], %27 {strides = array<i32>} : memref<4x16x32xf32, #tpu.memory_space<vmem>>, vector<4x16x32xf32>,
    %c0_14 = arith.constant 0 : index
    %c0_15 = arith.constant 0 : index
    %c0_16 = arith.constant 0 : index
    %29 = vector.load %arg12[%c0_14, %c0_15, %c0_16] : memref<4x1x32xf32, #tpu.memory_space<vmem>>, vector<4x1x32xf32>
    tpu.vector_store %arg12[%c0_14, %c0_15, %c0_16], %7 {strides = array<i32>} : memref<4x1x32xf32, #tpu.memory_space<vmem>>, vector<4x1x32xf32>,
    %cst_17 = arith.constant 1.06666672 : f32
    %30 = vector.broadcast %cst_17 : f32 to vector<4x1x32xf32>
    %31 = arith.mulf %14, %30 : vector<4x1x32xf32>
    %c0_18 = arith.constant 0 : index
    %c0_19 = arith.constant 0 : index
    %c0_20 = arith.constant 0 : index
    %32 = vector.load %arg13[%c0_18, %c0_19, %c0_20] : memref<4x1x32xf32, #tpu.memory_space<vmem>>, vector<4x1x32xf32>
    tpu.vector_store %arg13[%c0_18, %c0_19, %c0_20], %31 {strides = array<i32>} : memref<4x1x32xf32, #tpu.memory_space<vmem>>, vector<4x1x32xf32>,
    %33 = tpu.iota {dimensions = array<i32: 0>} : vector<8x1xi32>
    %c0_i32_21 = arith.constant 0 : i32
    %c4_i32 = arith.constant 4 : i32
    %34 = arith.muli %arg0, %c4_i32 : i32
    %35 = arith.addi %34, %c0_i32_21 : i32
    %36 = arith.index_cast %35 : i32 to index
    %37 = memref.load %arg1[%36] : memref<12xi32, #tpu.memory_space<smem>>
    %c0_i32_22 = arith.constant 0 : i32
    %c7_i32 = arith.constant 7 : i32
    %38 = arith.maxsi %c0_i32_22, %37 : i32
    %39 = arith.minsi %c7_i32, %38 : i32
    %40 = vector.broadcast %39 : i32 to vector<8x1xi32>
    %41 = arith.cmpi eq, %33, %40 : vector<8x1xi32>
    %c10_i32 = arith.constant 10 : i32
    %42 = arith.cmpi slt, %35, %c10_i32 : i32
    %43 = vector.broadcast %42 : i1 to vector<8x1xi1>
    %44 = arith.andi %41, %43 : vector<8x1xi1>
    %c0_23 = arith.constant 0 : index
    %c0_24 = arith.constant 0 : index
    %45 = vector.load %arg10[%c0_23, %c0_24] : memref<8x32xf32, #tpu.memory_space<vmem>>, vector<8x32xf32>
    %cst_25 = arith.constant 0.899999976 : f32
    %46 = vector.broadcast %cst_25 : f32 to vector<8x32xf32>
    %47 = arith.mulf %46, %45 : vector<8x32xf32>
    %48 = arith.index_cast %c0_i32_21 : i32 to index
    %c0_26 = arith.constant 0 : index
    %c0_27 = arith.constant 0 : index
    %49 = vector.load %arg12[%48, %c0_26, %c0_27] : memref<4x1x32xf32, #tpu.memory_space<vmem>>, vector<1x1x32xf32>
    %50 = vector.shape_cast %49 : vector<1x1x32xf32> to vector<1x32xf32>
    %cst_28 = arith.constant 1.000000e-01 : f32
    %51 = vector.broadcast %cst_28 : f32 to vector<1x32xf32>
    %52 = arith.mulf %51, %50 : vector<1x32xf32>
    %53 = vector.broadcast %52 : vector<1x32xf32> to vector<8x32xf32>
    %54 = arith.addf %47, %53 : vector<8x32xf32>
    %c0_29 = arith.constant 0 : index
    %c0_30 = arith.constant 0 : index
    %55 = vector.load %arg11[%c0_29, %c0_30] : memref<8x32xf32, #tpu.memory_space<vmem>>, vector<8x32xf32>
    %cst_31 = arith.constant 0.899999976 : f32
    %56 = vector.broadcast %cst_31 : f32 to vector<8x32xf32>
    %57 = arith.mulf %56, %55 : vector<8x32xf32>
    %58 = arith.index_cast %c0_i32_21 : i32 to index
    %c0_32 = arith.constant 0 : index
    %c0_33 = arith.constant 0 : index
    %59 = vector.load %arg13[%58, %c0_32, %c0_33] : memref<4x1x32xf32, #tpu.memory_space<vmem>>, vector<1x1x32xf32>
    %60 = vector.shape_cast %59 : vector<1x1x32xf32> to vector<1x32xf32>
    %cst_34 = arith.constant 1.000000e-01 : f32
    %61 = vector.broadcast %cst_34 : f32 to vector<1x32xf32>
    %62 = arith.mulf %61, %60 : vector<1x32xf32>
    %63 = vector.broadcast %62 : vector<1x32xf32> to vector<8x32xf32>
    %64 = arith.addf %57, %63 : vector<8x32xf32>
    %c0_35 = arith.constant 0 : index
    %c0_36 = arith.constant 0 : index
    %65 = vector.load %arg10[%c0_35, %c0_36] : memref<8x32xf32, #tpu.memory_space<vmem>>, vector<8x32xf32>
    %66 = vector.shape_cast %44 : vector<8x1xi1> to vector<8x1xi1>
    %67 = vector.broadcast %66 : vector<8x1xi1> to vector<8x32xi1>
    %68 = arith.select %67, %54, %65 : vector<8x32xi1>, vector<8x32xf32>
    %c0_37 = arith.constant 0 : index
    %c0_38 = arith.constant 0 : index
    %69 = vector.load %arg10[%c0_37, %c0_38] : memref<8x32xf32, #tpu.memory_space<vmem>>, vector<8x32xf32>
    tpu.vector_store %arg10[%c0_37, %c0_38], %68 {strides = array<i32>} : memref<8x32xf32, #tpu.memory_space<vmem>>, vector<8x32xf32>,
    %c0_39 = arith.constant 0 : index
    %c0_40 = arith.constant 0 : index
    %70 = vector.load %arg11[%c0_39, %c0_40] : memref<8x32xf32, #tpu.memory_space<vmem>>, vector<8x32xf32>
    %71 = vector.shape_cast %44 : vector<8x1xi1> to vector<8x1xi1>
    %72 = vector.broadcast %71 : vector<8x1xi1> to vector<8x32xi1>
    %73 = arith.select %72, %64, %70 : vector<8x32xi1>, vector<8x32xf32>
    %c0_41 = arith.constant 0 : index
    %c0_42 = arith.constant 0 : index
    %74 = vector.load %arg11[%c0_41, %c0_42] : memref<8x32xf32, #tpu.memory_space<vmem>>, vector<8x32xf32>
    tpu.vector_store %arg11[%c0_41, %c0_42], %73 {strides = array<i32>} : memref<8x32xf32, #tpu.memory_space<vmem>>, vector<8x32xf32>,
    %c1_i32 = arith.constant 1 : i32
    %c4_i32_43 = arith.constant 4 : i32
    %75 = arith.muli %arg0, %c4_i32_43 : i32
    %76 = arith.addi %75, %c1_i32 : i32
    %77 = arith.index_cast %76 : i32 to index
    %78 = memref.load %arg1[%77] : memref<12xi32, #tpu.memory_space<smem>>
    %c0_i32_44 = arith.constant 0 : i32
    %c7_i32_45 = arith.constant 7 : i32
    %79 = arith.maxsi %c0_i32_44, %78 : i32
    %80 = arith.minsi %c7_i32_45, %79 : i32
    %81 = vector.broadcast %80 : i32 to vector<8x1xi32>
    %82 = arith.cmpi eq, %33, %81 : vector<8x1xi32>
    %c10_i32_46 = arith.constant 10 : i32
    %83 = arith.cmpi slt, %76, %c10_i32_46 : i32
    %84 = vector.broadcast %83 : i1 to vector<8x1xi1>
    %85 = arith.andi %82, %84 : vector<8x1xi1>
    %c0_47 = arith.constant 0 : index
    %c0_48 = arith.constant 0 : index
    %86 = vector.load %arg10[%c0_47, %c0_48] : memref<8x32xf32, #tpu.memory_space<vmem>>, vector<8x32xf32>
    %cst_49 = arith.constant 0.899999976 : f32
    %87 = vector.broadcast %cst_49 : f32 to vector<8x32xf32>
    %88 = arith.mulf %87, %86 : vector<8x32xf32>
    %89 = arith.index_cast %c1_i32 : i32 to index
    %c0_50 = arith.constant 0 : index
    %c0_51 = arith.constant 0 : index
    %90 = vector.load %arg12[%89, %c0_50, %c0_51] : memref<4x1x32xf32, #tpu.memory_space<vmem>>, vector<1x1x32xf32>
    %91 = vector.shape_cast %90 : vector<1x1x32xf32> to vector<1x32xf32>
    %cst_52 = arith.constant 1.000000e-01 : f32
    %92 = vector.broadcast %cst_52 : f32 to vector<1x32xf32>
    %93 = arith.mulf %92, %91 : vector<1x32xf32>
    %94 = vector.broadcast %93 : vector<1x32xf32> to vector<8x32xf32>
    %95 = arith.addf %88, %94 : vector<8x32xf32>
    %c0_53 = arith.constant 0 : index
    %c0_54 = arith.constant 0 : index
    %96 = vector.load %arg11[%c0_53, %c0_54] : memref<8x32xf32, #tpu.memory_space<vmem>>, vector<8x32xf32>
    %cst_55 = arith.constant 0.899999976 : f32
    %97 = vector.broadcast %cst_55 : f32 to vector<8x32xf32>
    %98 = arith.mulf %97, %96 : vector<8x32xf32>
    %99 = arith.index_cast %c1_i32 : i32 to index
    %c0_56 = arith.constant 0 : index
    %c0_57 = arith.constant 0 : index
    %100 = vector.load %arg13[%99, %c0_56, %c0_57] : memref<4x1x32xf32, #tpu.memory_space<vmem>>, vector<1x1x32xf32>
    %101 = vector.shape_cast %100 : vector<1x1x32xf32> to vector<1x32xf32>
    %cst_58 = arith.constant 1.000000e-01 : f32
    %102 = vector.broadcast %cst_58 : f32 to vector<1x32xf32>
    %103 = arith.mulf %102, %101 : vector<1x32xf32>
    %104 = vector.broadcast %103 : vector<1x32xf32> to vector<8x32xf32>
    %105 = arith.addf %98, %104 : vector<8x32xf32>
    %c0_59 = arith.constant 0 : index
    %c0_60 = arith.constant 0 : index
    %106 = vector.load %arg10[%c0_59, %c0_60] : memref<8x32xf32, #tpu.memory_space<vmem>>, vector<8x32xf32>
    %107 = vector.shape_cast %85 : vector<8x1xi1> to vector<8x1xi1>
    %108 = vector.broadcast %107 : vector<8x1xi1> to vector<8x32xi1>
    %109 = arith.select %108, %95, %106 : vector<8x32xi1>, vector<8x32xf32>
    %c0_61 = arith.constant 0 : index
    %c0_62 = arith.constant 0 : index
    %110 = vector.load %arg10[%c0_61, %c0_62] : memref<8x32xf32, #tpu.memory_space<vmem>>, vector<8x32xf32>
    tpu.vector_store %arg10[%c0_61, %c0_62], %109 {strides = array<i32>} : memref<8x32xf32, #tpu.memory_space<vmem>>, vector<8x32xf32>,
    %c0_63 = arith.constant 0 : index
    %c0_64 = arith.constant 0 : index
    %111 = vector.load %arg11[%c0_63, %c0_64] : memref<8x32xf32, #tpu.memory_space<vmem>>, vector<8x32xf32>
    %112 = vector.shape_cast %85 : vector<8x1xi1> to vector<8x1xi1>
    %113 = vector.broadcast %112 : vector<8x1xi1> to vector<8x32xi1>
    %114 = arith.select %113, %105, %111 : vector<8x32xi1>, vector<8x32xf32>
    %c0_65 = arith.constant 0 : index
    %c0_66 = arith.constant 0 : index
    %115 = vector.load %arg11[%c0_65, %c0_66] : memref<8x32xf32, #tpu.memory_space<vmem>>, vector<8x32xf32>
    tpu.vector_store %arg11[%c0_65, %c0_66], %114 {strides = array<i32>} : memref<8x32xf32, #tpu.memory_space<vmem>>, vector<8x32xf32>,
    %c2_i32 = arith.constant 2 : i32
    %c4_i32_67 = arith.constant 4 : i32
    %116 = arith.muli %arg0, %c4_i32_67 : i32
    %117 = arith.addi %116, %c2_i32 : i32
    %118 = arith.index_cast %117 : i32 to index
    %119 = memref.load %arg1[%118] : memref<12xi32, #tpu.memory_space<smem>>
    %c0_i32_68 = arith.constant 0 : i32
    %c7_i32_69 = arith.constant 7 : i32
    %120 = arith.maxsi %c0_i32_68, %119 : i32
    %121 = arith.minsi %c7_i32_69, %120 : i32
    %122 = vector.broadcast %121 : i32 to vector<8x1xi32>
    %123 = arith.cmpi eq, %33, %122 : vector<8x1xi32>
    %c10_i32_70 = arith.constant 10 : i32
    %124 = arith.cmpi slt, %117, %c10_i32_70 : i32
    %125 = vector.broadcast %124 : i1 to vector<8x1xi1>
    %126 = arith.andi %123, %125 : vector<8x1xi1>
    %c0_71 = arith.constant 0 : index
    %c0_72 = arith.constant 0 : index
    %127 = vector.load %arg10[%c0_71, %c0_72] : memref<8x32xf32, #tpu.memory_space<vmem>>, vector<8x32xf32>
    %cst_73 = arith.constant 0.899999976 : f32
    %128 = vector.broadcast %cst_73 : f32 to vector<8x32xf32>
    %129 = arith.mulf %128, %127 : vector<8x32xf32>
    %130 = arith.index_cast %c2_i32 : i32 to index
    %c0_74 = arith.constant 0 : index
    %c0_75 = arith.constant 0 : index
    %131 = vector.load %arg12[%130, %c0_74, %c0_75] : memref<4x1x32xf32, #tpu.memory_space<vmem>>, vector<1x1x32xf32>
    %132 = vector.shape_cast %131 : vector<1x1x32xf32> to vector<1x32xf32>
    %cst_76 = arith.constant 1.000000e-01 : f32
    %133 = vector.broadcast %cst_76 : f32 to vector<1x32xf32>
    %134 = arith.mulf %133, %132 : vector<1x32xf32>
    %135 = vector.broadcast %134 : vector<1x32xf32> to vector<8x32xf32>
    %136 = arith.addf %129, %135 : vector<8x32xf32>
    %c0_77 = arith.constant 0 : index
    %c0_78 = arith.constant 0 : index
    %137 = vector.load %arg11[%c0_77, %c0_78] : memref<8x32xf32, #tpu.memory_space<vmem>>, vector<8x32xf32>
    %cst_79 = arith.constant 0.899999976 : f32
    %138 = vector.broadcast %cst_79 : f32 to vector<8x32xf32>
    %139 = arith.mulf %138, %137 : vector<8x32xf32>
    %140 = arith.index_cast %c2_i32 : i32 to index
    %c0_80 = arith.constant 0 : index
    %c0_81 = arith.constant 0 : index
    %141 = vector.load %arg13[%140, %c0_80, %c0_81] : memref<4x1x32xf32, #tpu.memory_space<vmem>>, vector<1x1x32xf32>
    %142 = vector.shape_cast %141 : vector<1x1x32xf32> to vector<1x32xf32>
    %cst_82 = arith.constant 1.000000e-01 : f32
    %143 = vector.broadcast %cst_82 : f32 to vector<1x32xf32>
    %144 = arith.mulf %143, %142 : vector<1x32xf32>
    %145 = vector.broadcast %144 : vector<1x32xf32> to vector<8x32xf32>
    %146 = arith.addf %139, %145 : vector<8x32xf32>
    %c0_83 = arith.constant 0 : index
    %c0_84 = arith.constant 0 : index
    %147 = vector.load %arg10[%c0_83, %c0_84] : memref<8x32xf32, #tpu.memory_space<vmem>>, vector<8x32xf32>
    %148 = vector.shape_cast %126 : vector<8x1xi1> to vector<8x1xi1>
    %149 = vector.broadcast %148 : vector<8x1xi1> to vector<8x32xi1>
    %150 = arith.select %149, %136, %147 : vector<8x32xi1>, vector<8x32xf32>
    %c0_85 = arith.constant 0 : index
    %c0_86 = arith.constant 0 : index
    %151 = vector.load %arg10[%c0_85, %c0_86] : memref<8x32xf32, #tpu.memory_space<vmem>>, vector<8x32xf32>
    tpu.vector_store %arg10[%c0_85, %c0_86], %150 {strides = array<i32>} : memref<8x32xf32, #tpu.memory_space<vmem>>, vector<8x32xf32>,
    %c0_87 = arith.constant 0 : index
    %c0_88 = arith.constant 0 : index
    %152 = vector.load %arg11[%c0_87, %c0_88] : memref<8x32xf32, #tpu.memory_space<vmem>>, vector<8x32xf32>
    %153 = vector.shape_cast %126 : vector<8x1xi1> to vector<8x1xi1>
    %154 = vector.broadcast %153 : vector<8x1xi1> to vector<8x32xi1>
    %155 = arith.select %154, %146, %152 : vector<8x32xi1>, vector<8x32xf32>
    %c0_89 = arith.constant 0 : index
    %c0_90 = arith.constant 0 : index
    %156 = vector.load %arg11[%c0_89, %c0_90] : memref<8x32xf32, #tpu.memory_space<vmem>>, vector<8x32xf32>
    tpu.vector_store %arg11[%c0_89, %c0_90], %155 {strides = array<i32>} : memref<8x32xf32, #tpu.memory_space<vmem>>, vector<8x32xf32>,
    %c3_i32 = arith.constant 3 : i32
    %c4_i32_91 = arith.constant 4 : i32
    %157 = arith.muli %arg0, %c4_i32_91 : i32
    %158 = arith.addi %157, %c3_i32 : i32
    %159 = arith.index_cast %158 : i32 to index
    %160 = memref.load %arg1[%159] : memref<12xi32, #tpu.memory_space<smem>>
    %c0_i32_92 = arith.constant 0 : i32
    %c7_i32_93 = arith.constant 7 : i32
    %161 = arith.maxsi %c0_i32_92, %160 : i32
    %162 = arith.minsi %c7_i32_93, %161 : i32
    %163 = vector.broadcast %162 : i32 to vector<8x1xi32>
    %164 = arith.cmpi eq, %33, %163 : vector<8x1xi32>
    %c10_i32_94 = arith.constant 10 : i32
    %165 = arith.cmpi slt, %158, %c10_i32_94 : i32
    %166 = vector.broadcast %165 : i1 to vector<8x1xi1>
    %167 = arith.andi %164, %166 : vector<8x1xi1>
    %c0_95 = arith.constant 0 : index
    %c0_96 = arith.constant 0 : index
    %168 = vector.load %arg10[%c0_95, %c0_96] : memref<8x32xf32, #tpu.memory_space<vmem>>, vector<8x32xf32>
    %cst_97 = arith.constant 0.899999976 : f32
    %169 = vector.broadcast %cst_97 : f32 to vector<8x32xf32>
    %170 = arith.mulf %169, %168 : vector<8x32xf32>
    %171 = arith.index_cast %c3_i32 : i32 to index
    %c0_98 = arith.constant 0 : index
    %c0_99 = arith.constant 0 : index
    %172 = vector.load %arg12[%171, %c0_98, %c0_99] : memref<4x1x32xf32, #tpu.memory_space<vmem>>, vector<1x1x32xf32>
    %173 = vector.shape_cast %172 : vector<1x1x32xf32> to vector<1x32xf32>
    %cst_100 = arith.constant 1.000000e-01 : f32
    %174 = vector.broadcast %cst_100 : f32 to vector<1x32xf32>
    %175 = arith.mulf %174, %173 : vector<1x32xf32>
    %176 = vector.broadcast %175 : vector<1x32xf32> to vector<8x32xf32>
    %177 = arith.addf %170, %176 : vector<8x32xf32>
    %c0_101 = arith.constant 0 : index
    %c0_102 = arith.constant 0 : index
    %178 = vector.load %arg11[%c0_101, %c0_102] : memref<8x32xf32, #tpu.memory_space<vmem>>, vector<8x32xf32>
    %cst_103 = arith.constant 0.899999976 : f32
    %179 = vector.broadcast %cst_103 : f32 to vector<8x32xf32>
    %180 = arith.mulf %179, %178 : vector<8x32xf32>
    %181 = arith.index_cast %c3_i32 : i32 to index
    %c0_104 = arith.constant 0 : index
    %c0_105 = arith.constant 0 : index
    %182 = vector.load %arg13[%181, %c0_104, %c0_105] : memref<4x1x32xf32, #tpu.memory_space<vmem>>, vector<1x1x32xf32>
    %183 = vector.shape_cast %182 : vector<1x1x32xf32> to vector<1x32xf32>
    %cst_106 = arith.constant 1.000000e-01 : f32
    %184 = vector.broadcast %cst_106 : f32 to vector<1x32xf32>
    %185 = arith.mulf %184, %183 : vector<1x32xf32>
    %186 = vector.broadcast %185 : vector<1x32xf32> to vector<8x32xf32>
    %187 = arith.addf %180, %186 : vector<8x32xf32>
    %c0_107 = arith.constant 0 : index
    %c0_108 = arith.constant 0 : index
    %188 = vector.load %arg10[%c0_107, %c0_108] : memref<8x32xf32, #tpu.memory_space<vmem>>, vector<8x32xf32>
    %189 = vector.shape_cast %167 : vector<8x1xi1> to vector<8x1xi1>
    %190 = vector.broadcast %189 : vector<8x1xi1> to vector<8x32xi1>
    %191 = arith.select %190, %177, %188 : vector<8x32xi1>, vector<8x32xf32>
    %c0_109 = arith.constant 0 : index
    %c0_110 = arith.constant 0 : index
    %192 = vector.load %arg10[%c0_109, %c0_110] : memref<8x32xf32, #tpu.memory_space<vmem>>, vector<8x32xf32>
    tpu.vector_store %arg10[%c0_109, %c0_110], %191 {strides = array<i32>} : memref<8x32xf32, #tpu.memory_space<vmem>>, vector<8x32xf32>,
    %c0_111 = arith.constant 0 : index
    %c0_112 = arith.constant 0 : index
    %193 = vector.load %arg11[%c0_111, %c0_112] : memref<8x32xf32, #tpu.memory_space<vmem>>, vector<8x32xf32>
    %194 = vector.shape_cast %167 : vector<8x1xi1> to vector<8x1xi1>
    %195 = vector.broadcast %194 : vector<8x1xi1> to vector<8x32xi1>
    %196 = arith.select %195, %187, %193 : vector<8x32xi1>, vector<8x32xf32>
    %c0_113 = arith.constant 0 : index
    %c0_114 = arith.constant 0 : index
    %197 = vector.load %arg11[%c0_113, %c0_114] : memref<8x32xf32, #tpu.memory_space<vmem>>, vector<8x32xf32>
    tpu.vector_store %arg11[%c0_113, %c0_114], %196 {strides = array<i32>} : memref<8x32xf32, #tpu.memory_space<vmem>>, vector<8x32xf32>,
    %c4_i32_115 = arith.constant 4 : i32
    %c2_i32_116 = arith.constant 2 : i32
    %198 = arith.cmpi eq, %arg0, %c2_i32_116 : i32
    %199 = arith.extui %198 : i1 to i32
    %c0_i32_117 = arith.constant 0 : i32
    %200 = arith.cmpi ne, %199, %c0_i32_117 : i32
    scf.if %200 {
      %c0_118 = arith.constant 0 : index
      %c0_119 = arith.constant 0 : index
      %201 = vector.load %arg10[%c0_118, %c0_119] : memref<8x32xf32, #tpu.memory_space<vmem>>, vector<8x32xf32>
      %c0_120 = arith.constant 0 : index
      %c0_121 = arith.constant 0 : index
      %202 = vector.load %arg8[%c0_120, %c0_121] : memref<8x32xf32, #tpu.memory_space<vmem>>, vector<8x32xf32>
      tpu.vector_store %arg8[%c0_120, %c0_121], %201 {strides = array<i32>} : memref<8x32xf32, #tpu.memory_space<vmem>>, vector<8x32xf32>,
      %c0_122 = arith.constant 0 : index
      %c0_123 = arith.constant 0 : index
      %203 = vector.load %arg11[%c0_122, %c0_123] : memref<8x32xf32, #tpu.memory_space<vmem>>, vector<8x32xf32>
      %c0_124 = arith.constant 0 : index
      %c0_125 = arith.constant 0 : index
      %204 = vector.load %arg9[%c0_124, %c0_125] : memref<8x32xf32, #tpu.memory_space<vmem>>, vector<8x32xf32>
      tpu.vector_store %arg9[%c0_124, %c0_125], %203 {strides = array<i32>} : memref<8x32xf32, #tpu.memory_space<vmem>>, vector<8x32xf32>,
    } else {
    }
    return
  }
  func.func @transform_0(%arg0: i32, %arg1: memref<12xi32, #tpu.memory_space<smem>>) -> (i32, i32, i32) {
    %c0_i32 = arith.constant 0 : i32
    %c0_i32_0 = arith.constant 0 : i32
    %c0_i32_1 = arith.constant 0 : i32
    return %arg0, %c0_i32, %c0_i32_0 : i32, i32, i32
  }
  func.func @transform_1(%arg0: i32, %arg1: memref<12xi32, #tpu.memory_space<smem>>) -> (i32, i32) {
    %c0_i32 = arith.constant 0 : i32
    %c0_i32_0 = arith.constant 0 : i32
    %c0_i32_1 = arith.constant 0 : i32
    return %c0_i32, %c0_i32_0 : i32, i32
  }
  func.func @transform_2(%arg0: i32, %arg1: memref<12xi32, #tpu.memory_space<smem>>) -> (i32, i32) {
    %c0_i32 = arith.constant 0 : i32
    %c0_i32_0 = arith.constant 0 : i32
    %c0_i32_1 = arith.constant 0 : i32
    return %c0_i32, %c0_i32_0 : i32, i32
  }
  func.func @transform_3(%arg0: i32, %arg1: memref<12xi32, #tpu.memory_space<smem>>) -> (i32, i32) {
    %c0_i32 = arith.constant 0 : i32
    %c0_i32_0 = arith.constant 0 : i32
    %c0_i32_1 = arith.constant 0 : i32
    return %c0_i32, %c0_i32_0 : i32, i32
  }
  func.func @transform_4(%arg0: i32, %arg1: memref<12xi32, #tpu.memory_space<smem>>) -> (i32, i32) {
    %c0_i32 = arith.constant 0 : i32
    %c0_i32_0 = arith.constant 0 : i32
    %c0_i32_1 = arith.constant 0 : i32
    return %c0_i32, %c0_i32_0 : i32, i32
  }
  func.func @transform_5(%arg0: i32, %arg1: memref<12xi32, #tpu.memory_space<smem>>) -> (i32, i32, i32) {
    %c0_i32 = arith.constant 0 : i32
    %c0_i32_0 = arith.constant 0 : i32
    %c0_i32_1 = arith.constant 0 : i32
    return %arg0, %c0_i32, %c0_i32_0 : i32, i32, i32
  }
  func.func @transform_6(%arg0: i32, %arg1: memref<12xi32, #tpu.memory_space<smem>>) -> (i32, i32) {
    %c0_i32 = arith.constant 0 : i32
    %c0_i32_0 = arith.constant 0 : i32
    %c0_i32_1 = arith.constant 0 : i32
    return %c0_i32, %c0_i32_0 : i32, i32
  }
  func.func @transform_7(%arg0: i32, %arg1: memref<12xi32, #tpu.memory_space<smem>>) -> (i32, i32) {
    %c0_i32 = arith.constant 0 : i32
    %c0_i32_0 = arith.constant 0 : i32
    %c0_i32_1 = arith.constant 0 : i32
    return %c0_i32, %c0_i32_0 : i32, i32
  }
}

</mosaic_0001>

<llo_original>
// kernel: tpu_custom_call.1
$region0: #{tpu_custom_call.1}
  #allocation0 [shape = 'u32[]', space=smem, size = 0x4, offset = 0x4, fixed_abs, tag = 'smem constant byte address 0x4 - core index']
  #allocation1 [shape = 'u32[144,128]{1,0:T(1,128)}', space=vmem, size = 0x12000, scoped, tag = 'internal scratch']
  #allocation2 [shape = 'f32[8,32]{1,0:T(8,128)}', space=vmem, size = 0x1000, scoped, tag = 'scratch operand']
  #allocation3 [shape = 'f32[8,32]{1,0:T(8,128)}', space=vmem, size = 0x1000, scoped, tag = 'scratch operand']
  #allocation4 [shape = 'f32[4,1,32]{2,1,0:T(1,128)}', space=vmem, size = 0x800, scoped, tag = 'scratch operand']
  #allocation5 [shape = 'f32[4,1,32]{2,1,0:T(1,128)}', space=vmem, size = 0x800, scoped, tag = 'scratch operand']
  #allocation6 [shape = 's32[1]{0}', space=sflag, size = 0x4, scoped, tag = 'scoped memory for tpu_custom_call.1']
  #allocation7 [shape = 'u8[512]{0}', space=smem, size = 0x200, scoped, tag = 'prefetched SMEM operand 0']
  %s0 = inlined_call_operand.hbm [shape: s32[12], index: 0, kind: input, shape index: {}]
  %s1 = inlined_call_operand.hbm [shape: f32[12,16,32], index: 1, kind: input, shape index: {}]
  %s2 = inlined_call_operand.hbm [shape: f32[8,32], index: 2, kind: input, shape index: {}]
  %s3 = inlined_call_operand.vmem [shape: f32[8,32], index: 3, kind: input, shape index: {}]
  %s4 = inlined_call_operand.vmem [shape: f32[1,32], index: 4, kind: input, shape index: {}]
  %s5 = inlined_call_operand.vmem [shape: f32[1,32], index: 5, kind: input, shape index: {}]
  %s6 = inlined_call_operand.hbm [shape: f32[12,16,32], index: 6, kind: output, shape index: {0}]
  %s7 = inlined_call_operand.hbm [shape: f32[8,32], index: 7, kind: output, shape index: {1}]
  %s8 = inlined_call_operand.hbm [shape: f32[8,32], index: 8, kind: output, shape index: {2}]
  %9 = xla_tuple %s6, %s7, %s8
  %s10 = sld [smem:[#allocation0]]
  $region85: #{tpu_custom_call.1} parent=0
    _
  %s12 = ssub.s32 1, %s10
  %s13 = scalar_select 0, %s12, %s10
  %15 = dma.hbm_to_smem %s0, 16, [#allocation7], [#allocation6]
  %16 = dma.done [#allocation6], 16
  %17 = sfence
  $region1: #{tpu_custom_call.1} parent=0
    #allocation8 [shape = 'u8[65536]{0}', space=vmem, size = 0x10000, scoped, tag = 'input window, operand 1']
    #allocation9 [shape = 's32[2]{0}', space=sflag, size = 0x8, scoped, tag = 'scoped memory for tpu_custom_call.1']
    #allocation10 [shape = 's32[2]{0}', space=sflag, size = 0x8, scoped, tag = 'scoped memory for tpu_custom_call.1']
    #allocation11 [shape = 'u8[4096]{0}', space=vmem, size = 0x1000, scoped, tag = 'input window, operand 2, single buffered']
    #allocation12 [shape = 's32[1]{0}', space=sflag, size = 0x4, scoped, tag = 'scoped memory for tpu_custom_call.1']
    #allocation13 [shape = 'u8[65536]{0}', space=vmem, size = 0x10000, scoped, tag = 'output window, operand 0']
    #allocation14 [shape = 'u8[4096]{0}', space=vmem, size = 0x1000, scoped, tag = 'output window, operand 1, single buffered']
    #allocation15 [shape = 's32[1]{0}', space=sflag, size = 0x4, scoped, tag = 'scoped memory for tpu_custom_call.1']
    #allocation16 [shape = 'u8[4096]{0}', space=vmem, size = 0x1000, scoped, tag = 'output window, operand 2, single buffered']
    %18 = vsyncpa [#allocation9], 0
    %s19 = scalar_lea.sflag [#allocation9], 1
    %20 = vsyncpa %s19, 0
    %21 = vsyncpa [#allocation12], 0
    %22 = vsyncpa [#allocation10], 0
    %s23 = scalar_lea.sflag [#allocation10], 1
    %24 = vsyncpa %s23, 0
    %25 = vsyncpa [#allocation15], 0
    loop: start=0, step=1, limit=5
    $region2: #{tpu_custom_call.1} parent=1 // loop_pre_header
      _
    $region3: #{tpu_custom_call.1} parent=1 // loop_header
      %s27 = sphi 0, %s31
      %p28 = scmp.ge.s32.totalorder %s27, 5
      %s37 = sphi 0, %s39
      %s40 = sphi 0, %s37
      %s41 = sphi 0, %s40
      %s57 = sphi 0, %s41
      %s61 = sphi 0, %s61
      %s63 = sphi 0, %s61
      %s64 = sphi 0, %s63
      %s78 = sphi 0, %s64
      %s82 = sphi 0, %s82
      %s84 = sphi 0, %s82
      %s85 = sphi 0, %s84
      %s99 = sphi 0, %s85
      %s103 = sphi 0, %s103
      %s105 = sphi 0, %s103
      %s106 = sphi 0, %s105
      %s120 = sphi 0, %s106
      %s124 = sphi 0, %s124
      %s126 = sphi 0, %s124
      %s127 = sphi 0, %s126
      %s141 = sphi 0, %s127
      %s147 = sphi 0, %s149
      %s150 = sphi 0, %s147
      %s151 = sphi 0, %s150
      %s167 = sphi 0, %s151
      %s171 = sphi 0, %s171
      %s173 = sphi 0, %s171
      %s174 = sphi 0, %s173
      %s188 = sphi 0, %s174
      %s192 = sphi 0, %s192
      %s194 = sphi 0, %s192
      %s195 = sphi 0, %s194
      %s209 = sphi 0, %s195
    $region4: #{tpu_custom_call.1} parent=1 // loop_header_branch
      %30 = sbr.rel (%p28) target = $region8
    $region5: #{tpu_custom_call.1} parent=1 // loop_body
      %s32 = ssub.s32 %s27, 1
      %s33 = ssub.s32 %s27, 2
      %s34 = sadd.s32 %s27, 1
      %s35 = ssub.s32 %s27, %s34
      %p36 = scmp.eq.s32.totalorder %s35, 0
      %s38 = sadd.s32 %s37, 1
      %s39 = scalar_select %p36, %s37, %s38
      %p42 = pneg %p36
      %p43 = scmp.eq.s32.totalorder %s27, 2
      %p44 = por %p42, %p43
      %p45 = scmp.ne.s32.totalorder %s37, %s40
      %p46 = scmp.eq.s32.totalorder %s27, 0
      %p47 = por %p45, %p46
      %p48 = scmp.ne.s32.totalorder %s37, %s40
      %p49 = scmp.eq.s32.totalorder %s32, 2
      %p50 = por %p48, %p49
      %p51 = scmp.ne.s32.totalorder %s40, %s41
      %p52 = scmp.eq.s32.totalorder %s32, 0
      %p53 = por %p51, %p52
      %p54 = scmp.ne.s32.totalorder %s40, %s41
      %p55 = scmp.eq.s32.totalorder %s33, 2
      %p56 = por %p54, %p55
      %p58 = scmp.ne.s32.totalorder %s41, %s57
      %p59 = scmp.eq.s32.totalorder %s33, 0
      %p60 = por %p58, %p59
      %s62 = sadd.s32 %s61, 1
      %p65 = scmp.eq.s32.totalorder %s27, 2
      %p66 = scmp.ne.s32.totalorder %s61, %s63
      %p67 = scmp.eq.s32.totalorder %s27, 0
      %p68 = por %p66, %p67
      %p69 = scmp.ne.s32.totalorder %s61, %s63
      %p70 = scmp.eq.s32.totalorder %s32, 2
      %p71 = por %p69, %p70
      %p72 = scmp.ne.s32.totalorder %s63, %s64
      %p73 = scmp.eq.s32.totalorder %s32, 0
      %p74 = por %p72, %p73
      %p75 = scmp.ne.s32.totalorder %s63, %s64
      %p76 = scmp.eq.s32.totalorder %s33, 2
      %p77 = por %p75, %p76
      %p79 = scmp.ne.s32.totalorder %s64, %s78
      %p80 = scmp.eq.s32.totalorder %s33, 0
      %p81 = por %p79, %p80
      %s83 = sadd.s32 %s82, 1
      %p86 = scmp.eq.s32.totalorder %s27, 2
      %p87 = scmp.ne.s32.totalorder %s82, %s84
      %p88 = scmp.eq.s32.totalorder %s27, 0
      %p89 = por %p87, %p88
      %p90 = scmp.ne.s32.totalorder %s82, %s84
      %p91 = scmp.eq.s32.totalorder %s32, 2
      %p92 = por %p90, %p91
      %p93 = scmp.ne.s32.totalorder %s84, %s85
      %p94 = scmp.eq.s32.totalorder %s32, 0
      %p95 = por %p93, %p94
      %p96 = scmp.ne.s32.totalorder %s84, %s85
      %p97 = scmp.eq.s32.totalorder %s33, 2
      %p98 = por %p96, %p97
      %p100 = scmp.ne.s32.totalorder %s85, %s99
      %p101 = scmp.eq.s32.totalorder %s33, 0
      %p102 = por %p100, %p101
      %s104 = sadd.s32 %s103, 1
      %p107 = scmp.eq.s32.totalorder %s27, 2
      %p108 = scmp.ne.s32.totalorder %s103, %s105
      %p109 = scmp.eq.s32.totalorder %s27, 0
      %p110 = por %p108, %p109
      %p111 = scmp.ne.s32.totalorder %s103, %s105
      %p112 = scmp.eq.s32.totalorder %s32, 2
      %p113 = por %p111, %p112
      %p114 = scmp.ne.s32.totalorder %s105, %s106
      %p115 = scmp.eq.s32.totalorder %s32, 0
      %p116 = por %p114, %p115
      %p117 = scmp.ne.s32.totalorder %s105, %s106
      %p118 = scmp.eq.s32.totalorder %s33, 2
      %p119 = por %p117, %p118
      %p121 = scmp.ne.s32.totalorder %s106, %s120
      %p122 = scmp.eq.s32.totalorder %s33, 0
      %p123 = por %p121, %p122
      %s125 = sadd.s32 %s124, 1
      %p128 = scmp.eq.s32.totalorder %s27, 2
      %p129 = scmp.ne.s32.totalorder %s124, %s126
      %p130 = scmp.eq.s32.totalorder %s27, 0
      %p131 = por %p129, %p130
      %p132 = scmp.ne.s32.totalorder %s124, %s126
      %p133 = scmp.eq.s32.totalorder %s32, 2
      %p134 = por %p132, %p133
      %p135 = scmp.ne.s32.totalorder %s126, %s127
      %p136 = scmp.eq.s32.totalorder %s32, 0
      %p137 = por %p135, %p136
      %p138 = scmp.ne.s32.totalorder %s126, %s127
      %p139 = scmp.eq.s32.totalorder %s33, 2
      %p140 = por %p138, %p139
      %p142 = scmp.ne.s32.totalorder %s127, %s141
      %p143 = scmp.eq.s32.totalorder %s33, 0
      %p144 = por %p142, %p143
      %s145 = ssub.s32 %s27, %s34
      %p146 = scmp.eq.s32.totalorder %s145, 0
      %s148 = sadd.s32 %s147, 1
      %s149 = scalar_select %p146, %s147, %s148
      %p152 = pneg %p146
      %p153 = scmp.eq.s32.totalorder %s27, 2
      %p154 = por %p152, %p153
      %p155 = scmp.ne.s32.totalorder %s147, %s150
      %p156 = scmp.eq.s32.totalorder %s27, 0
      %p157 = por %p155, %p156
      %p158 = scmp.ne.s32.totalorder %s147, %s150
      %p159 = scmp.eq.s32.totalorder %s32, 2
      %p160 = por %p158, %p159
      %p161 = scmp.ne.s32.totalorder %s150, %s151
      %p162 = scmp.eq.s32.totalorder %s32, 0
      %p163 = por %p161, %p162
      %p164 = scmp.ne.s32.totalorder %s150, %s151
      %p165 = scmp.eq.s32.totalorder %s33, 2
      %p166 = por %p164, %p165
      %p168 = scmp.ne.s32.totalorder %s151, %s167
      %p169 = scmp.eq.s32.totalorder %s33, 0
      %p170 = por %p168, %p169
      %s172 = sadd.s32 %s171, 1
      %p175 = scmp.eq.s32.totalorder %s27, 2
      %p176 = scmp.ne.s32.totalorder %s171, %s173
      %p177 = scmp.eq.s32.totalorder %s27, 0
      %p178 = por %p176, %p177
      %p179 = scmp.ne.s32.totalorder %s171, %s173
      %p180 = scmp.eq.s32.totalorder %s32, 2
      %p181 = por %p179, %p180
      %p182 = scmp.ne.s32.totalorder %s173, %s174
      %p183 = scmp.eq.s32.totalorder %s32, 0
      %p184 = por %p182, %p183
      %p185 = scmp.ne.s32.totalorder %s173, %s174
      %p186 = scmp.eq.s32.totalorder %s33, 2
      %p187 = por %p185, %p186
      %p189 = scmp.ne.s32.totalorder %s174, %s188
      %p190 = scmp.eq.s32.totalorder %s33, 0
      %p191 = por %p189, %p190
      %s193 = sadd.s32 %s192, 1
      %p196 = scmp.eq.s32.totalorder %s27, 2
      %p197 = scmp.ne.s32.totalorder %s192, %s194
      %p198 = scmp.eq.s32.totalorder %s27, 0
      %p199 = por %p197, %p198
      %p200 = scmp.ne.s32.totalorder %s192, %s194
      %p201 = scmp.eq.s32.totalorder %s32, 2
      %p202 = por %p200, %p201
      %p203 = scmp.ne.s32.totalorder %s194, %s195
      %p204 = scmp.eq.s32.totalorder %s32, 0
      %p205 = por %p203, %p204
      %p206 = scmp.ne.s32.totalorder %s194, %s195
      %p207 = scmp.eq.s32.totalorder %s33, 2
      %p208 = por %p206, %p207
      %p210 = scmp.ne.s32.totalorder %s195, %s209
      %p211 = scmp.eq.s32.totalorder %s33, 0
      %p212 = por %p210, %p211
      %p213 = scmp.le.s32.totalorder 1, %s27
      %p214 = scmp.lt.s32.totalorder %s27, 4
      %p215 = pnand %p213, %p214
      %p216 = pneg %p215
      // Predicated region
      $region9: #{tpu_custom_call.1} parent=5 // pred_check
        _
      $region10: #{tpu_custom_call.1} parent=5 // pred_check_branch
        %218 = sbr.rel (%p215) target = $region12
      $region11: #{tpu_custom_call.1} parent=5 // pred_region
        %s219 = ssub.s32 %s27, 1
        // Predicated region
        $region13: #{tpu_custom_call.1} parent=11 // pred_check
          %p220 = pneg %p74
        $region14: #{tpu_custom_call.1} parent=11 // pred_check_branch
          %222 = sbr.rel (%p220) target = $region16
        $region15: #{tpu_custom_call.1} parent=11 // pred_region
          %s224 = ssub.s32 128, 128
          %225 = vsyncadd [#allocation12], %s224
          %s227 = sshll.u32 [#allocation11], 4
          %s228 = int_to_ptr.vmem [resolvable:$true] %s227
          %230 = dma.hbm_to_vmem [thread:$0]  %s2, 128, %s228, [#allocation12]
        $region16: #{tpu_custom_call.1} parent=11 // pred_fallthru
          _
        // Predicated region
        $region17: #{tpu_custom_call.1} parent=11 // pred_check
          %p231 = pneg %p95
        $region18: #{tpu_custom_call.1} parent=11 // pred_check_branch
          %233 = sbr.rel (%p231) target = $region20
        $region19: #{tpu_custom_call.1} parent=11 // pred_region
          _
        $region20: #{tpu_custom_call.1} parent=11 // pred_fallthru
          _
        // Predicated region
        $region21: #{tpu_custom_call.1} parent=11 // pred_check
          %p234 = pneg %p116
        $region22: #{tpu_custom_call.1} parent=11 // pred_check_branch
          %236 = sbr.rel (%p234) target = $region24
        $region23: #{tpu_custom_call.1} parent=11 // pred_region
          _
        $region24: #{tpu_custom_call.1} parent=11 // pred_fallthru
          _
        // Predicated region
        $region25: #{tpu_custom_call.1} parent=11 // pred_check
          %p237 = pneg %p137
        $region26: #{tpu_custom_call.1} parent=11 // pred_check_branch
          %239 = sbr.rel (%p237) target = $region28
        $region27: #{tpu_custom_call.1} parent=11 // pred_region
          _
        $region28: #{tpu_custom_call.1} parent=11 // pred_fallthru
          _
      $region12: #{tpu_custom_call.1} parent=5 // pred_fallthru
        _
      %p240 = scmp.lt.s32.totalorder %s27, 3
      // Predicated region
      $region29: #{tpu_custom_call.1} parent=5 // pred_check
        %p241 = pneg %p240
      $region30: #{tpu_custom_call.1} parent=5 // pred_check_branch
        %243 = sbr.rel (%p241) target = $region32
      $region31: #{tpu_custom_call.1} parent=5 // pred_region
        // Predicated region
        $region33: #{tpu_custom_call.1} parent=31 // pred_check
          %p244 = pneg %p47
        $region34: #{tpu_custom_call.1} parent=31 // pred_check_branch
          %246 = sbr.rel (%p244) target = $region36
        $region35: #{tpu_custom_call.1} parent=31 // pred_region
          %s247 = sand.u32 %s37, 1
          %s248 = scalar_lea.sflag [#allocation9], %s247
          %s249 = sand.u32 %s37, 1
          %s250 = smul.addr %s249, 64
          %s251 = scalar_lea.vmem [#allocation8], %s250
          %s252 = smul.u32 4, %s27
          %s254 = ssub.s32 1024, 1024
          %255 = vsyncadd %s248, %s254
          %s256 = smul.addr %s252, 2
          %s257 = smul.addr %s256, 128
          %s258 = scalar_lea.hbm %s1, %s257
          %s259 = sshll.u32 %s251, 4
          %s260 = int_to_ptr.vmem [resolvable:$true] %s259
          %265 = dma.hbm_to_vmem [thread:$0]  %s258, 1024, %s260, %s248, 128, 128, 8
        $region36: #{tpu_custom_call.1} parent=31 // pred_fallthru
          _
      $region32: #{tpu_custom_call.1} parent=5 // pred_fallthru
        _
      %p266 = scmp.le.s32.totalorder 1, %s27
      %p267 = scmp.lt.s32.totalorder %s27, 4
      %p268 = pnand %p266, %p267
      %p269 = pneg %p268
      // Predicated region
      $region37: #{tpu_custom_call.1} parent=5 // pred_check
        _
      $region38: #{tpu_custom_call.1} parent=5 // pred_check_branch
        %271 = sbr.rel (%p268) target = $region40
      $region39: #{tpu_custom_call.1} parent=5 // pred_region
        %s272 = ssub.s32 %s27, 1
        %s273 = sand.u32 %s40, 1
        %s274 = scalar_lea.sflag [#allocation9], %s273
        %s275 = sand.u32 %s40, 1
        %s276 = smul.addr %s275, 64
        %s277 = scalar_lea.vmem [#allocation8], %s276
        // Predicated region
        $region41: #{tpu_custom_call.1} parent=39 // pred_check
          %p278 = pneg %p53
        $region42: #{tpu_custom_call.1} parent=39 // pred_check_branch
          %280 = sbr.rel (%p278) target = $region44
        $region43: #{tpu_custom_call.1} parent=39 // pred_region
          %281 = dma.done %s274, 1024
        $region44: #{tpu_custom_call.1} parent=39 // pred_fallthru
          _
        // Predicated region
        $region45: #{tpu_custom_call.1} parent=39 // pred_check
          %p282 = pneg %p74
        $region46: #{tpu_custom_call.1} parent=39 // pred_check_branch
          %284 = sbr.rel (%p282) target = $region48
        $region47: #{tpu_custom_call.1} parent=39 // pred_region
          %285 = dma.done [#allocation12], 128
        $region48: #{tpu_custom_call.1} parent=39 // pred_fallthru
          _
        %s286 = sand.u32 %s40, 1
        %s287 = scalar_lea.sflag [#allocation9], %s286
        %s288 = sand.u32 %s40, 1
        %s289 = smul.addr %s288, 64
        %s290 = scalar_lea.vmem [#allocation8], %s289
        %p291 = pneg %p53
        %p292 = pneg %p50
        %p293 = pneg %p74
        %p294 = pneg %p71
        %p295 = pneg %p95
        %p296 = pneg %p92
        %p297 = pneg %p116
        %p298 = pneg %p113
        %p299 = pneg %p137
        %p300 = pneg %p134
        %p301 = pneg %p163
        %p302 = pneg %p160
        %s303 = sand.u32 %s150, 1
        %s304 = scalar_lea.sflag [#allocation10], %s303
        %s305 = sand.u32 %s150, 1
        %s306 = smul.addr %s305, 64
        %s307 = scalar_lea.vmem [#allocation13], %s306
        %p308 = pneg %p184
        %p309 = pneg %p181
        %p310 = pneg %p205
        %p311 = pneg %p202
        %s312 = smul.u32 4, %s32
        %s313 = smul.u32 4, %s32
        %p314 = scmp.eq.s32.totalorder %s32, 0
        // Predicated region
        $region49: #{tpu_custom_call.1} parent=39 // pred_check
          %p315 = pneg %p314
        $region50: #{tpu_custom_call.1} parent=39 // pred_check_branch
          %317 = sbr.rel (%p315) target = $region52
        $region51: #{tpu_custom_call.1} parent=39 // pred_region
          %v318 = vld [vmem:[#allocation11] sm:$0xff]
          %vm319 = vcmask 261120
          %320 = vst.msk [vmem:[#allocation2] sm:$0xff] %vm319, %v318
          %v321 = vld [vmem:[%s3] sm:$0xff]
          %322 = vst.msk [vmem:[#allocation3] sm:$0xff] %vm319, %v321
        $region52: #{tpu_custom_call.1} parent=39 // pred_fallthru
          _
        %v323 = vld [vmem:[%s277] sm:$0xff]
        %v324 = vld [vmem:[%s277 + $0x8] sm:$0xff]
        %v325 = vld [vmem:[%s277 + $0x10] sm:$0xff]
        %v326 = vld [vmem:[%s277 + $0x18] sm:$0xff]
        %v327 = vld [vmem:[%s277 + $0x20] sm:$0xff]
        %v328 = vld [vmem:[%s277 + $0x28] sm:$0xff]
        %v329 = vld [vmem:[%s277 + $0x30] sm:$0xff]
        %v330 = vld [vmem:[%s277 + $0x38] sm:$0xff]
        %vm331 = vcmask 261120
        %v332 = vsel %vm331, %v323, 0.0
        %v333 = vsel %vm331, %v324, 0.0
        %v334 = vadd.f32 %v332, %v333
        %v335 = vrot.slane %v334, 4
        %v336 = vadd.f32 %v334, %v335
        %v337 = vrot.slane %v336, 2
        %v338 = vadd.f32 %v336, %v337
        %v339 = vrot.slane %v338, 1
        %v340 = vadd.f32 %v338, %v339
        %v341 = vsel %vm331, %v325, 0.0
        %v342 = vsel %vm331, %v326, 0.0
        %v343 = vadd.f32 %v341, %v342
        %v344 = vrot.slane %v343, 4
        %v345 = vadd.f32 %v343, %v344
        %v346 = vrot.slane %v345, 2
        %v347 = vadd.f32 %v345, %v346
        %v348 = vrot.slane %v347, 1
        %v349 = vadd.f32 %v347, %v348
        %v350 = vsel %vm331, %v327, 0.0
        %v351 = vsel %vm331, %v328, 0.0
        %v352 = vadd.f32 %v350, %v351
        %v353 = vrot.slane %v352, 4
        %v354 = vadd.f32 %v352, %v353
        %v355 = vrot.slane %v354, 2
        %v356 = vadd.f32 %v354, %v355
        %v357 = vrot.slane %v356, 1
        %v358 = vadd.f32 %v356, %v357
        %v359 = vsel %vm331, %v329, 0.0
        %v360 = vsel %vm331, %v330, 0.0
        %v361 = vadd.f32 %v359, %v360
        %v362 = vrot.slane %v361, 4
        %v363 = vadd.f32 %v361, %v362
        %v364 = vrot.slane %v363, 2
        %v365 = vadd.f32 %v363, %v364
        %v366 = vrot.slane %v365, 1
        %v367 = vadd.f32 %v365, %v366
        %v368 = vrcp.pop 16.0
        %v369 = vmul.f32 %v340, %v368
        %v370 = vmul.f32 %v349, %v368
        %v371 = vmul.f32 %v358, %v368
        %v372 = vmul.f32 %v367, %v368
        %v373 = vsub.f32 %v323, %v369
        %v374 = vsub.f32 %v324, %v369
        %v375 = vsub.f32 %v325, %v370
        %v376 = vsub.f32 %v326, %v370
        %v377 = vsub.f32 %v327, %v371
        %v378 = vsub.f32 %v328, %v371
        %v379 = vsub.f32 %v329, %v372
        %v380 = vsub.f32 %v330, %v372
        %v381 = vmul.f32 %v373, %v373
        %v382 = vmul.f32 %v374, %v374
        %v383 = vmul.f32 %v375, %v375
        %v384 = vmul.f32 %v376, %v376
        %v385 = vmul.f32 %v377, %v377
        %v386 = vmul.f32 %v378, %v378
        %v387 = vmul.f32 %v379, %v379
        %v388 = vmul.f32 %v380, %v380
        %v389 = vsel %vm331, %v381, 0.0
        %v390 = vsel %vm331, %v382, 0.0
        %v391 = vadd.f32 %v389, %v390
        %v392 = vrot.slane %v391, 4
        %v393 = vadd.f32 %v391, %v392
        %v394 = vrot.slane %v393, 2
        %v395 = vadd.f32 %v393, %v394
        %v396 = vrot.slane %v395, 1
        %v397 = vadd.f32 %v395, %v396
        %v398 = vsel %vm331, %v383, 0.0
        %v399 = vsel %vm331, %v384, 0.0
        %v400 = vadd.f32 %v398, %v399
        %v401 = vrot.slane %v400, 4
        %v402 = vadd.f32 %v400, %v401
        %v403 = vrot.slane %v402, 2
        %v404 = vadd.f32 %v402, %v403
        %v405 = vrot.slane %v404, 1
        %v406 = vadd.f32 %v404, %v405
        %v407 = vsel %vm331, %v385, 0.0
        %v408 = vsel %vm331, %v386, 0.0
        %v409 = vadd.f32 %v407, %v408
        %v410 = vrot.slane %v409, 4
        %v411 = vadd.f32 %v409, %v410
        %v412 = vrot.slane %v411, 2
        %v413 = vadd.f32 %v411, %v412
        %v414 = vrot.slane %v413, 1
        %v415 = vadd.f32 %v413, %v414
        %v416 = vsel %vm331, %v387, 0.0
        %v417 = vsel %vm331, %v388, 0.0
        %v418 = vadd.f32 %v416, %v417
        %v419 = vrot.slane %v418, 4
        %v420 = vadd.f32 %v418, %v419
        %v421 = vrot.slane %v420, 2
        %v422 = vadd.f32 %v420, %v421
        %v423 = vrot.slane %v422, 1
        %v424 = vadd.f32 %v422, %v423
        %v425 = vmul.f32 %v397, %v368
        %v426 = vmul.f32 %v406, %v368
        %v427 = vmul.f32 %v415, %v368
        %v428 = vmul.f32 %v424, %v368
        %v429 = vadd.f32 %v425, 1e-05
        %v430 = vadd.f32 %v426, 1e-05
        %v431 = vadd.f32 %v427, 1e-05
        %v432 = vadd.f32 %v428, 1e-05
        %v433 = vrsqrt.pop %v429
        %v434 = vrsqrt.pop %v430
        %v435 = vrsqrt.pop %v431
        %v436 = vrsqrt.pop %v432
        %v437 = vld [vmem:[%s4] sm:$0x1]
        %v438 = vld [vmem:[%s5] sm:$0x1]
        %v439 = vmul.f32 %v373, %v433
        %v440 = vmul.f32 %v374, %v433
        %v441 = vmul.f32 %v375, %v434
        %v442 = vmul.f32 %v376, %v434
        %v443 = vmul.f32 %v377, %v435
        %v444 = vmul.f32 %v378, %v435
        %v445 = vmul.f32 %v379, %v436
        %v446 = vmul.f32 %v380, %v436
        %v448 = vlaneseq
        %v449 = vshrl.u32 %v448, 7
        %v450 = vsub.s32 0, %v449
        %v451 = vrot.slane %v437, %v450
        %v453 = vmul.f32 %v439, %v451
        %v454 = vmul.f32 %v440, %v451
        %v455 = vmul.f32 %v441, %v451
        %v456 = vmul.f32 %v442, %v451
        %v457 = vmul.f32 %v443, %v451
        %v458 = vmul.f32 %v444, %v451
        %v459 = vmul.f32 %v445, %v451
        %v460 = vmul.f32 %v446, %v451
        %v462 = vlaneseq
        %v463 = vshrl.u32 %v462, 7
        %v464 = vsub.s32 0, %v463
        %v465 = vrot.slane %v438, %v464
        %v467 = vadd.f32 %v453, %v465
        %v468 = vadd.f32 %v454, %v465
        %v469 = vadd.f32 %v455, %v465
        %v470 = vadd.f32 %v456, %v465
        %v471 = vadd.f32 %v457, %v465
        %v472 = vadd.f32 %v458, %v465
        %v473 = vadd.f32 %v459, %v465
        %v474 = vadd.f32 %v460, %v465
        %475 = vst.msk [vmem:[%s307] sm:$0xff] %vm331, %v467
        %476 = vst.msk [vmem:[%s307 + $0x8] sm:$0xff] %vm331, %v468
        %477 = vst.msk [vmem:[%s307 + $0x10] sm:$0xff] %vm331, %v469
        %478 = vst.msk [vmem:[%s307 + $0x18] sm:$0xff] %vm331, %v470
        %479 = vst.msk [vmem:[%s307 + $0x20] sm:$0xff] %vm331, %v471
        %480 = vst.msk [vmem:[%s307 + $0x28] sm:$0xff] %vm331, %v472
        %481 = vst.msk [vmem:[%s307 + $0x30] sm:$0xff] %vm331, %v473
        %482 = vst.msk [vmem:[%s307 + $0x38] sm:$0xff] %vm331, %v474
        %vm483 = vcmask 253952
        %484 = vst.msk [vmem:[#allocation4] sm:$0x1] %vm483, %v369
        %485 = vst.msk [vmem:[#allocation4 + $0x1] sm:$0x1] %vm483, %v370
        %486 = vst.msk [vmem:[#allocation4 + $0x2] sm:$0x1] %vm483, %v371
        %487 = vst.msk [vmem:[#allocation4 + $0x3] sm:$0x1] %vm483, %v372
        %v488 = vmul.f32 %v425, 1.0666667
        %v489 = vmul.f32 %v426, 1.0666667
        %v490 = vmul.f32 %v427, 1.0666667
        %v491 = vmul.f32 %v428, 1.0666667
        %492 = vst.msk [vmem:[#allocation5] sm:$0x1] %vm483, %v488
        %493 = vst.msk [vmem:[#allocation5 + $0x1] sm:$0x1] %vm483, %v489
        %494 = vst.msk [vmem:[#allocation5 + $0x2] sm:$0x1] %vm483, %v490
        %495 = vst.msk [vmem:[#allocation5 + $0x3] sm:$0x1] %vm483, %v491
        %v496 = vlaneseq
        %v497 = vshrl.u32 %v496, 7
        %s498 = smul.u32 %s32, 4
        %s499 = sld [smem:[#allocation7 + %s498]]
        %p500 = scmp.gt.s32.totalorder %s499, 0
        %s501 = scalar_select %p500, %s499, 0
        %p502 = scmp.lt.s32.totalorder %s501, 7
        %s503 = scalar_select %p502, %s501, 7
        %v504 = vstv %s503
        %vm505 = vcmp.eq.s32.totalorder %v497, %v504
        %p506 = scmp.lt.s32.totalorder %s498, 10
        %s507 = scalar_select %p506, 1, 0
        %v508 = vstv %s507
        %vm509 = vcmp.eq.s32.totalorder %v508, 1
        %vm510 = vmand %vm505, %vm509
        %v511 = vld [vmem:[#allocation2] sm:$0xff]
        %v512 = vmul.f32 %v511, 0.9
        %v513 = vld [vmem:[#allocation4] sm:$0x1]
        %v514 = vmul.f32 %v513, 0.1
        %v516 = vlaneseq
        %v517 = vshrl.u32 %v516, 7
        %v518 = vsub.s32 0, %v517
        %v519 = vrot.slane %v514, %v518
        %v521 = vadd.f32 %v512, %v519
        %v522 = vld [vmem:[#allocation3] sm:$0xff]
        %v523 = vmul.f32 %v522, 0.9
        %v524 = vld [vmem:[#allocation5] sm:$0x1]
        %v525 = vmul.f32 %v524, 0.1
        %v527 = vlaneseq
        %v528 = vshrl.u32 %v527, 7
        %v529 = vsub.s32 0, %v528
        %v530 = vrot.slane %v525, %v529
        %v532 = vadd.f32 %v523, %v530
        %v533 = vsel %vm510, 1, 0
        %vm534 = vcmp.eq.s32.totalorder %v533, 1
        %v535 = vsel %vm534, %v521, %v511
        %536 = vst.msk [vmem:[#allocation2] sm:$0xff] %vm331, %v535
        %v537 = vld [vmem:[#allocation3] sm:$0xff]
        %v538 = vsel %vm534, %v532, %v537
        %539 = vst.msk [vmem:[#allocation3] sm:$0xff] %vm331, %v538
        %s540 = sadd.s32 %s498, 1
        %s541 = sld [smem:[#allocation7 + %s540]]
        %p542 = scmp.gt.s32.totalorder %s541, 0
        %s543 = scalar_select %p542, %s541, 0
        %p544 = scmp.lt.s32.totalorder %s543, 7
        %s545 = scalar_select %p544, %s543, 7
        %v546 = vstv %s545
        %vm547 = vcmp.eq.s32.totalorder %v497, %v546
        %p548 = scmp.lt.s32.totalorder %s540, 10
        %s549 = scalar_select %p548, 1, 0
        %v550 = vstv %s549
        %vm551 = vcmp.eq.s32.totalorder %v550, 1
        %vm552 = vmand %vm547, %vm551
        %v553 = vld [vmem:[#allocation2] sm:$0xff]
        %v554 = vmul.f32 %v553, 0.9
        %s555 = scalar_lea.vmem [#allocation4], 1
        %v556 = vld [vmem:[%s555] sm:$0x1]
        %v557 = vmul.f32 %v556, 0.1
        %v559 = vlaneseq
        %v560 = vshrl.u32 %v559, 7
        %v561 = vsub.s32 0, %v560
        %v562 = vrot.slane %v557, %v561
        %v564 = vadd.f32 %v554, %v562
        %v565 = vld [vmem:[#allocation3] sm:$0xff]
        %v566 = vmul.f32 %v565, 0.9
        %s567 = scalar_lea.vmem [#allocation5], 1
        %v568 = vld [vmem:[%s567] sm:$0x1]
        %v569 = vmul.f32 %v568, 0.1
        %v571 = vlaneseq
        %v572 = vshrl.u32 %v571, 7
        %v573 = vsub.s32 0, %v572
        %v574 = vrot.slane %v569, %v573
        %v576 = vadd.f32 %v566, %v574
        %v577 = vsel %vm552, 1, 0
        %vm578 = vcmp.eq.s32.totalorder %v577, 1
        %v579 = vsel %vm578, %v564, %v553
        %580 = vst.msk [vmem:[#allocation2] sm:$0xff] %vm331, %v579
        %v581 = vld [vmem:[#allocation3] sm:$0xff]
        %v582 = vsel %vm578, %v576, %v581
        %583 = vst.msk [vmem:[#allocation3] sm:$0xff] %vm331, %v582
        %s584 = sadd.s32 %s498, 2
        %s585 = sld [smem:[#allocation7 + %s584]]
        %p586 = scmp.gt.s32.totalorder %s585, 0
        %s587 = scalar_select %p586, %s585, 0
        %p588 = scmp.lt.s32.totalorder %s587, 7
        %s589 = scalar_select %p588, %s587, 7
        %v590 = vstv %s589
        %vm591 = vcmp.eq.s32.totalorder %v497, %v590
        %p592 = scmp.lt.s32.totalorder %s584, 10
        %s593 = scalar_select %p592, 1, 0
        %v594 = vstv %s593
        %vm595 = vcmp.eq.s32.totalorder %v594, 1
        %vm596 = vmand %vm591, %vm595
        %v597 = vld [vmem:[#allocation2] sm:$0xff]
        %v598 = vmul.f32 %v597, 0.9
        %s599 = scalar_lea.vmem [#allocation4], 2
        %v600 = vld [vmem:[%s599] sm:$0x1]
        %v601 = vmul.f32 %v600, 0.1
        %v603 = vlaneseq
        %v604 = vshrl.u32 %v603, 7
        %v605 = vsub.s32 0, %v604
        %v606 = vrot.slane %v601, %v605
        %v608 = vadd.f32 %v598, %v606
        %v609 = vld [vmem:[#allocation3] sm:$0xff]
        %v610 = vmul.f32 %v609, 0.9
        %s611 = scalar_lea.vmem [#allocation5], 2
        %v612 = vld [vmem:[%s611] sm:$0x1]
        %v613 = vmul.f32 %v612, 0.1
        %v615 = vlaneseq
        %v616 = vshrl.u32 %v615, 7
        %v617 = vsub.s32 0, %v616
        %v618 = vrot.slane %v613, %v617
        %v620 = vadd.f32 %v610, %v618
        %v621 = vsel %vm596, 1, 0
        %vm622 = vcmp.eq.s32.totalorder %v621, 1
        %v623 = vsel %vm622, %v608, %v597
        %624 = vst.msk [vmem:[#allocation2] sm:$0xff] %vm331, %v623
        %v625 = vld [vmem:[#allocation3] sm:$0xff]
        %v626 = vsel %vm622, %v620, %v625
        %627 = vst.msk [vmem:[#allocation3] sm:$0xff] %vm331, %v626
        %s628 = sadd.s32 %s498, 3
        %s629 = sld [smem:[#allocation7 + %s628]]
        %p630 = scmp.gt.s32.totalorder %s629, 0
        %s631 = scalar_select %p630, %s629, 0
        %p632 = scmp.lt.s32.totalorder %s631, 7
        %s633 = scalar_select %p632, %s631, 7
        %v634 = vstv %s633
        %vm635 = vcmp.eq.s32.totalorder %v497, %v634
        %p636 = scmp.lt.s32.totalorder %s628, 10
        %s637 = scalar_select %p636, 1, 0
        %v638 = vstv %s637
        %vm639 = vcmp.eq.s32.totalorder %v638, 1
        %vm640 = vmand %vm635, %vm639
        %v641 = vld [vmem:[#allocation2] sm:$0xff]
        %v642 = vmul.f32 %v641, 0.9
        %s643 = scalar_lea.vmem [#allocation4], 3
        %v644 = vld [vmem:[%s643] sm:$0x1]
        %v645 = vmul.f32 %v644, 0.1
        %v647 = vlaneseq
        %v648 = vshrl.u32 %v647, 7
        %v649 = vsub.s32 0, %v648
        %v650 = vrot.slane %v645, %v649
        %v652 = vadd.f32 %v642, %v650
        %v653 = vld [vmem:[#allocation3] sm:$0xff]
        %v654 = vmul.f32 %v653, 0.9
        %s655 = scalar_lea.vmem [#allocation5], 3
        %v656 = vld [vmem:[%s655] sm:$0x1]
        %v657 = vmul.f32 %v656, 0.1
        %v659 = vlaneseq
        %v660 = vshrl.u32 %v659, 7
        %v661 = vsub.s32 0, %v660
        %v662 = vrot.slane %v657, %v661
        %v664 = vadd.f32 %v654, %v662
        %v665 = vsel %vm640, 1, 0
        %vm666 = vcmp.eq.s32.totalorder %v665, 1
        %v667 = vsel %vm666, %v652, %v641
        %668 = vst.msk [vmem:[#allocation2] sm:$0xff] %vm331, %v667
        %v669 = vld [vmem:[#allocation3] sm:$0xff]
        %v670 = vsel %vm666, %v664, %v669
        %671 = vst.msk [vmem:[#allocation3] sm:$0xff] %vm331, %v670
        %p672 = scmp.eq.s32.totalorder %s32, 2
        // Predicated region
        $region53: #{tpu_custom_call.1} parent=39 // pred_check
          %p673 = pneg %p672
        $region54: #{tpu_custom_call.1} parent=39 // pred_check_branch
          %675 = sbr.rel (%p673) target = $region56
        $region55: #{tpu_custom_call.1} parent=39 // pred_region
          %v676 = vld [vmem:[#allocation2] sm:$0xff]
          %677 = vst.msk [vmem:[#allocation14] sm:$0xff] %vm331, %v676
          %v678 = vld [vmem:[#allocation3] sm:$0xff]
          %679 = vst.msk [vmem:[#allocation16] sm:$0xff] %vm331, %v678
        $region56: #{tpu_custom_call.1} parent=39 // pred_fallthru
          _
        %s680 = sand.u32 %s150, 1
        %s681 = scalar_lea.sflag [#allocation10], %s680
        %s682 = sand.u32 %s150, 1
        %s683 = smul.addr %s682, 64
        %s684 = scalar_lea.vmem [#allocation13], %s683
        // Predicated region
        $region57: #{tpu_custom_call.1} parent=39 // pred_check
          %p685 = pneg %p160
        $region58: #{tpu_custom_call.1} parent=39 // pred_check_branch
          %687 = sbr.rel (%p685) target = $region60
        $region59: #{tpu_custom_call.1} parent=39 // pred_region
          %s688 = smul.u32 4, %s32
          %s690 = ssub.s32 1024, 1024
          %691 = vsyncadd %s681, %s690
          %s692 = smul.addr %s688, 2
          %s693 = smul.addr %s692, 128
          %s694 = scalar_lea.hbm %s6, %s693
          %s695 = sshll.u32 %s684, 4
          %s696 = int_to_ptr.vmem [resolvable:$true] %s695
          %701 = dma.vmem_to_hbm [thread:$0]  %s696, 1024, %s694, %s681, 128, 128, 8
        $region60: #{tpu_custom_call.1} parent=39 // pred_fallthru
          _
        // Predicated region
        $region61: #{tpu_custom_call.1} parent=39 // pred_check
          %p702 = pneg %p181
        $region62: #{tpu_custom_call.1} parent=39 // pred_check_branch
          %704 = sbr.rel (%p702) target = $region64
        $region63: #{tpu_custom_call.1} parent=39 // pred_region
          %s706 = ssub.s32 128, 128
          %707 = vsyncadd [#allocation15], %s706
          %s709 = sshll.u32 [#allocation14], 4
          %s710 = int_to_ptr.vmem [resolvable:$true] %s709
          %712 = dma.vmem_to_hbm [thread:$0]  %s710, 128, %s7, [#allocation15]
        $region64: #{tpu_custom_call.1} parent=39 // pred_fallthru
          _
        // Predicated region
        $region65: #{tpu_custom_call.1} parent=39 // pred_check
          %p713 = pneg %p202
        $region66: #{tpu_custom_call.1} parent=39 // pred_check_branch
          %715 = sbr.rel (%p713) target = $region68
        $region67: #{tpu_custom_call.1} parent=39 // pred_region
          %s717 = ssub.s32 128, 128
          %718 = vsyncadd [#allocation15], %s717
          %s720 = sshll.u32 [#allocation16], 4
          %s721 = int_to_ptr.vmem [resolvable:$true] %s720
          %723 = dma.vmem_to_hbm [thread:$0]  %s721, 128, %s8, [#allocation15]
        $region68: #{tpu_custom_call.1} parent=39 // pred_fallthru
          _
        // Predicated region
        $region69: #{tpu_custom_call.1} parent=39 // pred_check
          %p724 = pneg %p181
        $region70: #{tpu_custom_call.1} parent=39 // pred_check_branch
          %726 = sbr.rel (%p724) target = $region72
        $region71: #{tpu_custom_call.1} parent=39 // pred_region
          %727 = dma.done [#allocation15], 128
        $region72: #{tpu_custom_call.1} parent=39 // pred_fallthru
          _
        // Predicated region
        $region73: #{tpu_custom_call.1} parent=39 // pred_check
          %p728 = pneg %p202
        $region74: #{tpu_custom_call.1} parent=39 // pred_check_branch
          %730 = sbr.rel (%p728) target = $region76
        $region75: #{tpu_custom_call.1} parent=39 // pred_region
          %731 = dma.done [#allocation15], 128
        $region76: #{tpu_custom_call.1} parent=39 // pred_fallthru
          _
      $region40: #{tpu_custom_call.1} parent=5 // pred_fallthru
        _
      %p732 = scmp.le.s32.totalorder 2, %s27
      // Predicated region
      $region77: #{tpu_custom_call.1} parent=5 // pred_check
        %p733 = pneg %p732
      $region78: #{tpu_custom_call.1} parent=5 // pred_check_branch
        %735 = sbr.rel (%p733) target = $region80
      $region79: #{tpu_custom_call.1} parent=5 // pred_region
        %s736 = ssub.s32 %s27, 2
        // Predicated region
        $region81: #{tpu_custom_call.1} parent=79 // pred_check
          %p737 = pneg %p166
        $region82: #{tpu_custom_call.1} parent=79 // pred_check_branch
          %739 = sbr.rel (%p737) target = $region84
        $region83: #{tpu_custom_call.1} parent=79 // pred_region
          %s740 = sand.u32 %s151, 1
          %s741 = scalar_lea.sflag [#allocation10], %s740
          %s742 = sand.u32 %s151, 1
          %s743 = smul.addr %s742, 64
          %s744 = scalar_lea.vmem [#allocation13], %s743
          %745 = dma.done %s741, 1024
        $region84: #{tpu_custom_call.1} parent=79 // pred_fallthru
          _
      $region80: #{tpu_custom_call.1} parent=5 // pred_fallthru
        _
    $region6: #{tpu_custom_call.1} parent=1 // loop_footer
      %s31 = sadd.s32 1, %s27
    $region7: #{tpu_custom_call.1} parent=1 // loop_footer_branch
      %26 = sbr.rel target = $region3
    $region8: #{tpu_custom_call.1} parent=1 // loop_exit
      _
    %746 = vsyncpa [#allocation9], 1
    %s747 = scalar_lea.sflag [#allocation9], 1
    %748 = vsyncpa %s747, 1
    %749 = vsyncpa [#allocation12], 1
    %750 = vsyncpa [#allocation10], 1
    %s751 = scalar_lea.sflag [#allocation10], 1
    %752 = vsyncpa %s751, 1
    %753 = vsyncpa [#allocation15], 1

</llo_original>
